<compile_context>
chip_gen: v7x
topology: tpu7x:2x2x1
jax: 0.10.0
libtpu: 0.0.40
codegen_flags: <defaults>
</compile_context>

<pallas_src>
import functools

import jax
import jax.numpy as jnp
from jax.experimental import pallas as pl
from jax.experimental.pallas import tpu as pltpu


def _round_up(v, m):
    return ((v + m - 1) // m) * m


def _hw_vmem_bytes():
    """Per-core VMEM capacity (generation-dependent) with a safe fallback."""
    try:
        info = pltpu.get_tpu_info()
        for attr in ("vmem_capacity_bytes", "vmem_size_bytes", "vmem_bytes"):
            v = getattr(info, attr, None)
            if v:
                return int(v)
    except Exception:
        pass
    return 64 * 1024 * 1024  # conservative: v7x per-TensorCore VMEM


def _bbox_regressor_kernel(x_ref, w_ref, shift_ref, o_ref, acc_ref, *,
                           tk, k_total, mask_k):
    # x_ref:     (tn, tk)   flattened-input tile (native dtype)
    # w_ref:     (kp, OUT)  FULL pool+BN-folded weight, VMEM-resident
    # shift_ref: (1, OUT)   folded bias + BN shift (f32)
    # o_ref:     (tn, OUT)  bbox deltas tile
    # acc_ref:   (tn, OUT)  f32 accumulator (VMEM scratch)
    kk = pl.program_id(1)

    @pl.when(kk == 0)
    def _():
        acc_ref[...] = jnp.zeros_like(acc_ref)

    # Slice the current K tile out of the resident weight (no HBM refetch).
    off = pl.multiple_of(kk * tk, 128)
    w_tile = w_ref[pl.ds(off, tk), :]

    x_tile = x_ref[...]
    if mask_k:
        # Last K tile overhangs the true contraction length: zero the stale
        # lanes instead of padding the activation tensor in HBM.
        col = kk * tk + jax.lax.broadcasted_iota(jnp.int32, x_tile.shape, 1)
        x_tile = jnp.where(col < k_total, x_tile, jnp.zeros_like(x_tile))

    acc_ref[...] += jnp.dot(x_tile, w_tile, preferred_element_type=jnp.float32)

    @pl.when(kk == pl.num_programs(1) - 1)
    def _():
        o_ref[...] = (acc_ref[...] + shift_ref[...]).astype(o_ref.dtype)


def prepare_bbox_regressor(params, *, spatial_size=1, x_dtype=jnp.float32,
                           block_k=4096):
    """One-time host-side folding (call once, NOT per forward).

    Folds eval-mode BN + the global average pool into the linear weight,
    pads the contraction dim to a whole number of K tiles and casts to the
    activation dtype.  Returns a dict consumed by bbox_regressor_forward.
    """
    weight = params["weight"]                       # (OUT, C)
    out_dim, c = weight.shape
    hw = int(spatial_size)
    k = c * hw

    # Eval-mode BN fold: y = (x W^T + b - mu) * s + beta, s = gamma/sqrt(var+eps)
    scale = params["bn_weight"] / jnp.sqrt(params["bn_var"] + params["bn_eps"])
    w_fold = jnp.transpose(weight).astype(jnp.float32) * scale[None, :]   # (C, OUT)
    shift = ((params["bias"] - params["bn_mean"]) * scale
             + params["bn_bias"]).reshape(1, out_dim).astype(jnp.float32)

    # Fold the global average pool: row c*HW+s of W' is W[:, c] / HW.
    if hw > 1:
        w_exp = jnp.repeat(w_fold, hw, axis=0) * jnp.float32(1.0 / hw)    # (C*HW, OUT)
    else:
        w_exp = w_fold

    # K tile: multiple of 128, <= block_k, and <= floor128(k) so x blocks never
    # exceed the activation's K extent (the last, overhanging tile is masked
    # in-kernel).  k < 128 uses a single 128-wide tile (tiny activation pad).
    block_k = max(128, (int(block_k) // 128) * 128)
    tk = 128 if k < 128 else min(block_k, (k // 128) * 128)
    num_k = -(-k // tk)
    kp = num_k * tk
    if kp != k:
        w_exp = jnp.pad(w_exp, ((0, kp - k), (0, 0)))
    w_exp = w_exp.astype(x_dtype)
    # NOTE: for bf16 activations the 1/HW and BN scales are quantized into the
    # bf16 weight; the additive shift stays in the f32 epilogue.  Move the
    # scales there too if bit-closeness to the f32 reference matters.

    return {"w_exp": w_exp, "shift": shift, "k": k, "tk": tk, "hw": hw,
            "out_dim": out_dim}


def bbox_regressor_forward(x, prepared, *, block_n=256):
    """BBoxRegressor forward (eval-mode BN) as a tiled Pallas matmul."""
    w_exp, shift = prepared["w_exp"], prepared["shift"]
    k, tk, hw, out_dim = (prepared["k"], prepared["tk"], prepared["hw"],
                          prepared["out_dim"])
    kp = w_exp.shape[0]
    num_k = kp // tk

    if x.ndim == 4:
        n, c, h, w = x.shape
        if h * w != hw or c * h * w != k:
            raise ValueError(f"input shape {x.shape[1:]} does not match prepared "
                             f"(C*HW={k}, HW={hw})")
        x_flat = x.reshape(n, k)        # free: NCHW is (c, h, w)-contiguous
    elif x.ndim == 2:
        n = x.shape[0]
        if hw != 1 or x.shape[1] != k:
            raise ValueError(f"2-D input width {x.shape[1]} does not match "
                             f"prepared K={k} (needs spatial_size=1)")
        x_flat = x
    else:
        raise ValueError(f"unsupported input rank {x.ndim}")

    # Sub-128 K: pad the (tiny) activation to the single tile; otherwise leave
    # x untouched and mask the overhanging tail of the last K tile in-kernel.
    if k < tk:
        x_flat = jnp.pad(x_flat, ((0, 0), (0, tk - k)))
        k_eff = tk
    else:
        k_eff = k
    mask_k = (k_eff % tk) != 0

    # N tile: multiple of 8 (or the full dim when N < 8).  Guarantee >= 2 blocks
    # on the "parallel" axis when possible so v7x's second TensorCore gets work.
    tn = n if n < 8 else min(block_n, (n // 8) * 8)
    if n >= 16 and -(-n // tn) < 2:
        tn = min(tn, _round_up(-(-n // 2), 8))

    # Generation-aware VMEM budget: shrink tn if the double-buffered residency
    # would not fit, then derive the scoped limit from the actual need.
    x_isz = jnp.dtype(x.dtype).itemsize
    w_isz = jnp.dtype(w_exp.dtype).itemsize

    def _residency(tn_):
        return (2 * tn_ * tk * x_isz          # x tile, double-buffered
                + 2 * kp * out_dim * w_isz    # resident weight (x2, conservative)
                + 2 * out_dim * 4             # shift
                + 2 * tn_ * out_dim * x_isz   # output tile
                + tn_ * out_dim * 4)          # f32 accumulator scratch

    hw_vmem = _hw_vmem_bytes()
    budget = int(hw_vmem * 0.7)
    while tn > 8 and _residency(tn) > budget:
        tn = max(8, ((tn // 2) // 8) * 8)
    vmem_limit = int(min(hw_vmem - (4 << 20),
                         max(32 << 20, _residency(tn) + (8 << 20))))

    grid = (pl.cdiv(n, tn), num_k)

    cost = pl.CostEstimate(
        flops=2 * n * k * out_dim,
        transcendentals=0,
        bytes_accessed=(n * k_eff * x_isz          # x read once
                        + kp * out_dim * w_isz     # weight read once (resident)
                        + n * out_dim * x_isz),    # output written once
    )

    kernel = functools.partial(_bbox_regressor_kernel,
                               tk=tk, k_total=k_eff, mask_k=mask_k)

    out = pl.pallas_call(
        kernel,
        out_shape=jax.ShapeDtypeStruct((n, out_dim), x.dtype),
        grid_spec=pltpu.PrefetchScalarGridSpec(
            num_scalar_prefetch=0,
            grid=grid,
            in_specs=[
                pl.BlockSpec((tn, tk), lambda i, kk: (i, kk)),
                pl.BlockSpec((kp, out_dim), lambda i, kk: (0, 0)),   # VMEM-resident
                pl.BlockSpec((1, out_dim), lambda i, kk: (0, 0)),
            ],
            out_specs=pl.BlockSpec((tn, out_dim), lambda i, kk: (i, 0)),
            scratch_shapes=[pltpu.VMEM((tn, out_dim), jnp.float32)],
        ),
        compiler_params=pltpu.CompilerParams(
            dimension_semantics=("parallel", "arbitrary"),
            vmem_limit_bytes=vmem_limit,
        ),
        cost_estimate=cost,
    )(x_flat, w_exp, shift)
    return out


def init_bbox_regressor_params(key, in_channels, num_classes=2):
    """Deterministic init matching BBoxRegressor.__init__ (bn_neck=True)."""
    out_dim = 4 * num_classes
    k_lin, k_bn = jax.random.split(key)
    return {
        # init.normal_(linear.weight, std=0.01); init.constant_(linear.bias, 0)
        "weight": 0.01 * jax.random.normal(k_lin, (out_dim, in_channels), jnp.float32),
        "bias": jnp.zeros((out_dim,), jnp.float32),
        # init.normal_(bn.weight, std=0.01); init.constant_(bn.bias, 0)
        "bn_weight": 0.01 * jax.random.normal(k_bn, (out_dim,), jnp.float32),
        "bn_bias": jnp.zeros((out_dim,), jnp.float32),
        # fresh BatchNorm1d running stats
        "bn_mean": jnp.zeros((out_dim,), jnp.float32),
        "bn_var": jnp.ones((out_dim,), jnp.float32),
        "bn_eps": jnp.float32(1e-5),
    }


def _reference_forward(x, params):
    """Pure-JAX reference (same semantics) for a correctness check."""
    if x.ndim == 4:
        x = jnp.mean(x, axis=(2, 3))
    y = x @ params["weight"].T + params["bias"]
    scale = params["bn_weight"] / jnp.sqrt(params["bn_var"] + params["bn_eps"])
    return (y - params["bn_mean"]) * scale + params["bn_bias"]


if __name__ == "__main__":
    key = jax.random.PRNGKey(0)
    kx1, kx2, kx3, kp1, kp2 = jax.random.split(key, 5)

    num_classes = 2
    OUT = 4 * num_classes

    # 1) 4-D input, K = C*H*W = 24*49 = 1176 (not 128-aligned); a small block_k
    #    forces a multi-step K reduction with an in-kernel-masked tail tile.
    N1, C1, H1, W1 = 5, 24, 7, 7
    params1 = init_bbox_regressor_params(kp1, in_channels=C1, num_classes=num_classes)
    prep1 = prepare_bbox_regressor(params1, spatial_size=H1 * W1, block_k=512)
    x1 = jax.random.normal(kx1, (N1, C1, H1, W1), jnp.float32)
    out1 = jax.block_until_ready(bbox_regressor_forward(x1, prep1))
    ref1 = _reference_forward(x1, params1)
    assert out1.shape == (N1, OUT)
    assert jnp.allclose(out1, ref1, atol=1e-6, rtol=1e-5)

    # 2) 4-D input with 128-aligned K (C*HW = 32*64 = 2048) and N=16, which is
    #    split into two "parallel" N tiles (megacore-shardable on v7x).
    N2, C2, H2, W2 = 16, 32, 8, 8
    params2 = init_bbox_regressor_params(kp2, in_channels=C2, num_classes=num_classes)
    prep2 = prepare_bbox_regressor(params2, spatial_size=H2 * W2)
    x2 = jax.random.normal(kx2, (N2, C2, H2, W2), jnp.float32)
    out2 = jax.block_until_ready(bbox_regressor_forward(x2, prep2))
    ref2 = _reference_forward(x2, params2)
    assert out2.shape == (N2, OUT)
    assert jnp.allclose(out2, ref2, atol=1e-6, rtol=1e-5)

    # 3) 2-D (already pooled/flattened) input: K = 32 < 128 -> single padded tile.
    N3 = 2
    prep3 = prepare_bbox_regressor(params2, spatial_size=1)
    x3 = jax.random.normal(kx3, (N3, C2), jnp.float32)
    out3 = jax.block_until_ready(bbox_regressor_forward(x3, prep3))
    ref3 = _reference_forward(x3, params2)
    assert out3.shape == (N3, OUT)
    assert jnp.allclose(out3, ref3, atol=1e-6, rtol=1e-5)

    print("KERNEL_OK")
</pallas_src>

<mosaic_0001>
module attributes {stable_mosaic.version = 11 : i64} {
  func.func @_bbox_regressor_kernel(%arg0: i32, %arg1: i32, %arg2: memref<5x512xf32, #tpu.memory_space<vmem>>, %arg3: memref<1536x8xf32, #tpu.memory_space<vmem>>, %arg4: memref<1x8xf32, #tpu.memory_space<vmem>>, %arg5: memref<5x8xf32, #tpu.memory_space<vmem>>, %arg6: memref<5x8xf32, #tpu.memory_space<vmem>>) attributes {dimension_semantics = [#tpu.dimension_semantics<parallel>, #tpu.dimension_semantics<arbitrary>], iteration_bounds = array<i64: 1, 3>, scalar_prefetch = 0 : i64, scratch_operands = 1 : i64, tpu.core_type = #tpu.core_type<tc>, window_params = [{transform_indices = @transform_0, window_bounds = array<i64: 5, 512>}, {pipeline_mode = #tpu.pipeline_mode<synchronous>, transform_indices = @transform_1, window_bounds = array<i64: 1536, 8>}, {pipeline_mode = #tpu.pipeline_mode<synchronous>, transform_indices = @transform_2, window_bounds = array<i64: 1, 8>}, {transform_indices = @transform_3, window_bounds = array<i64: 5, 8>}]} {
    %c0_i32 = arith.constant 0 : i32
    %0 = arith.cmpi eq, %arg1, %c0_i32 : i32
    %1 = arith.extui %0 : i1 to i32
    %c0_i32_0 = arith.constant 0 : i32
    %2 = arith.cmpi ne, %1, %c0_i32_0 : i32
    scf.if %2 {
      %cst_10 = arith.constant 0.000000e+00 : f32
      %23 = vector.broadcast %cst_10 : f32 to vector<5x8xf32>
      %c0_11 = arith.constant 0 : index
      %c0_12 = arith.constant 0 : index
      %24 = vector.load %arg6[%c0_11, %c0_12] : memref<5x8xf32, #tpu.memory_space<vmem>>, vector<5x8xf32>
      tpu.vector_store %arg6[%c0_11, %c0_12], %23 {strides = array<i32>} : memref<5x8xf32, #tpu.memory_space<vmem>>, vector<5x8xf32>,
    } else {
    }
    %c512_i32 = arith.constant 512 : i32
    %3 = arith.muli %arg1, %c512_i32 : i32
    %4 = tpu.assume_multiple %3, 128 : i32
    %5 = arith.index_cast %4 : i32 to index
    %c0 = arith.constant 0 : index
    %6 = vector.load %arg3[%5, %c0] : memref<1536x8xf32, #tpu.memory_space<vmem>>, vector<512x8xf32>
    %c0_1 = arith.constant 0 : index
    %c0_2 = arith.constant 0 : index
    %7 = vector.load %arg2[%c0_1, %c0_2] : memref<5x512xf32, #tpu.memory_space<vmem>>, vector<5x512xf32>
    %c512_i32_3 = arith.constant 512 : i32
    %8 = arith.muli %arg1, %c512_i32_3 : i32
    %9 = tpu.iota {dimensions = array<i32: 1>} : vector<5x512xi32>
    %10 = vector.broadcast %8 : i32 to vector<5x512xi32>
    %11 = arith.addi %10, %9 : vector<5x512xi32>
    %c1176_i32 = arith.constant 1176 : i32
    %12 = vector.broadcast %c1176_i32 : i32 to vector<5x512xi32>
    %13 = arith.cmpi slt, %11, %12 : vector<5x512xi32>
    %cst = arith.constant 0.000000e+00 : f32
    %14 = vector.broadcast %cst : f32 to vector<5x512xf32>
    %15 = arith.select %13, %7, %14 : vector<5x512xi1>, vector<5x512xf32>
    %c0_4 = arith.constant 0 : index
    %c0_5 = arith.constant 0 : index
    %16 = vector.load %arg6[%c0_4, %c0_5] : memref<5x8xf32, #tpu.memory_space<vmem>>, vector<5x8xf32>
    %cst_6 = arith.constant dense<0.000000e+00> : vector<5x8xf32>
    %17 = tpu.matmul %15, %6, %cst_6 {dimension_numbers = #tpu.dot_dimension_numbers<[1], [0], [0], [1], [0, 0, 1, 1], [], []>} : vector<5x512xf32>, vector<512x8xf32>, vector<5x8xf32> -> vector<5x8xf32>
    %18 = arith.addf %16, %17 : vector<5x8xf32>
    %c0_7 = arith.constant 0 : index
    %c0_8 = arith.constant 0 : index
    %19 = vector.load %arg6[%c0_7, %c0_8] : memref<5x8xf32, #tpu.memory_space<vmem>>, vector<5x8xf32>
    tpu.vector_store %arg6[%c0_7, %c0_8], %18 {strides = array<i32>} : memref<5x8xf32, #tpu.memory_space<vmem>>, vector<5x8xf32>,
    %c2_i32 = arith.constant 2 : i32
    %20 = arith.cmpi eq, %arg1, %c2_i32 : i32
    %21 = arith.extui %20 : i1 to i32
    %c0_i32_9 = arith.constant 0 : i32
    %22 = arith.cmpi ne, %21, %c0_i32_9 : i32
    scf.if %22 {
      %c0_10 = arith.constant 0 : index
      %c0_11 = arith.constant 0 : index
      %23 = vector.load %arg6[%c0_10, %c0_11] : memref<5x8xf32, #tpu.memory_space<vmem>>, vector<5x8xf32>
      %c0_12 = arith.constant 0 : index
      %c0_13 = arith.constant 0 : index
      %24 = vector.load %arg4[%c0_12, %c0_13] : memref<1x8xf32, #tpu.memory_space<vmem>>, vector<1x8xf32>
      %25 = vector.broadcast %24 : vector<1x8xf32> to vector<5x8xf32>
      %26 = arith.addf %23, %25 : vector<5x8xf32>
      %c0_14 = arith.constant 0 : index
      %c0_15 = arith.constant 0 : index
      %27 = vector.load %arg5[%c0_14, %c0_15] : memref<5x8xf32, #tpu.memory_space<vmem>>, vector<5x8xf32>
      tpu.vector_store %arg5[%c0_14, %c0_15], %26 {strides = array<i32>} : memref<5x8xf32, #tpu.memory_space<vmem>>, vector<5x8xf32>,
    } else {
    }
    return
  }
  func.func @transform_0(%arg0: i32, %arg1: i32) -> (i32, i32) {
    %c0_i32 = arith.constant 0 : i32
    return %arg0, %arg1 : i32, i32
  }
  func.func @transform_1(%arg0: i32, %arg1: i32) -> (i32, i32) {
    %c0_i32 = arith.constant 0 : i32
    %c0_i32_0 = arith.constant 0 : i32
    %c0_i32_1 = arith.constant 0 : i32
    return %c0_i32, %c0_i32_0 : i32, i32
  }
  func.func @transform_2(%arg0: i32, %arg1: i32) -> (i32, i32) {
    %c0_i32 = arith.constant 0 : i32
    %c0_i32_0 = arith.constant 0 : i32
    %c0_i32_1 = arith.constant 0 : i32
    return %c0_i32, %c0_i32_0 : i32, i32
  }
  func.func @transform_3(%arg0: i32, %arg1: i32) -> (i32, i32) {
    %c0_i32 = arith.constant 0 : i32
    %c0_i32_0 = arith.constant 0 : i32
    return %arg0, %c0_i32 : i32, i32
  }
}

</mosaic_0001>

<llo_original>
// kernel: tpu_custom_call.1
$region0: #{tpu_custom_call.1}
  #allocation0 [shape = 'u32[]', space=smem, size = 0x4, offset = 0x4, fixed_abs, tag = 'smem constant byte address 0x4 - core index']
  #allocation1 [shape = 'u32[144,128]{1,0:T(1,128)}', space=vmem, size = 0x12000, scoped, tag = 'internal scratch']
  #allocation2 [shape = 'f32[5,8]{1,0:T(8,128)}', space=vmem, size = 0x1000, scoped, tag = 'scratch operand']
  %s0 = inlined_call_operand.vmem [shape: f32[5,1176], index: 0, kind: input, shape index: {}]
  %s1 = inlined_call_operand.vmem [shape: f32[1536,8], index: 1, kind: input, shape index: {}]
  %s2 = inlined_call_operand.vmem [shape: f32[1,8], index: 2, kind: input, shape index: {}]
  %s3 = inlined_call_operand.hbm [shape: f32[5,8], index: 3, kind: output, shape index: {}]
  %s4 = sld [smem:[#allocation0]]
  $region53: #{tpu_custom_call.1} parent=0
    _
  %s6 = ssub.s32 1, %s4
  %s7 = scalar_select 0, %s6, %s4
  $region1: #{tpu_custom_call.1} parent=0
    #allocation3 [shape = 'u8[4096]{0}', space=vmem, size = 0x1000, scoped, tag = 'output window, operand 0, single buffered']
    #allocation4 [shape = 's32[2]{0}', space=sflag, size = 0x8, scoped, tag = 'scoped memory for tpu_custom_call.1']
    %8 = vsyncpa [#allocation4], 0
    loop: start=0, step=1, limit=5
    $region2: #{tpu_custom_call.1} parent=1 // loop_pre_header
      _
    $region3: #{tpu_custom_call.1} parent=1 // loop_header
      %s10 = sphi 0, %s14
      %p11 = scmp.ge.s32.totalorder %s10, 5
      %s17 = sphi 0, %s29
      %s18 = sphi 0, %s25
      %s19 = sphi 0, %s17
      %s20 = sphi 0, %s18
      %s21 = sphi 0, %s19
      %s22 = sphi 0, %s20
      %s34 = sphi 0, %s36
      %s37 = sphi 0, %s34
      %s38 = sphi 0, %s37
      %s54 = sphi 0, %s38
      %s58 = sphi 0, %s58
      %s60 = sphi 0, %s58
      %s61 = sphi 0, %s60
      %s75 = sphi 0, %s61
      %s79 = sphi 0, %s79
      %s81 = sphi 0, %s79
      %s82 = sphi 0, %s81
      %s96 = sphi 0, %s82
      %s102 = sphi 0, %s104
      %s105 = sphi 0, %s102
      %s106 = sphi 0, %s105
      %s122 = sphi 0, %s106
    $region4: #{tpu_custom_call.1} parent=1 // loop_header_branch
      %13 = sbr.rel (%p11) target = $region8
    $region5: #{tpu_custom_call.1} parent=1 // loop_body
      %s15 = ssub.s32 %s10, 1
      %s16 = ssub.s32 %s10, 2
      %s23 = sadd.s32 1, %s18
      %p24 = scmp.ge.s32.totalorder %s23, 3
      %s25 = scalar_select %p24, 0, %s23
      %s26 = sadd.s32 1, %s17
      %s27 = scalar_select %p24, %s26, %s17
      %p28 = scmp.ge.s32.totalorder %s27, 1
      %s29 = scalar_select %p28, 0, %s27
      %s30 = ssub.s32 %s17, %s29
      %s31 = ssub.s32 %s18, %s25
      %s32 = sor.u32 %s30, %s31
      %p33 = scmp.eq.s32.totalorder %s32, 0
      %s35 = sadd.s32 %s34, 1
      %s36 = scalar_select %p33, %s34, %s35
      %p39 = pneg %p33
      %p40 = scmp.eq.s32.totalorder %s10, 2
      %p41 = por %p39, %p40
      %p42 = scmp.ne.s32.totalorder %s34, %s37
      %p43 = scmp.eq.s32.totalorder %s10, 0
      %p44 = por %p42, %p43
      %p45 = scmp.ne.s32.totalorder %s34, %s37
      %p46 = scmp.eq.s32.totalorder %s15, 2
      %p47 = por %p45, %p46
      %p48 = scmp.ne.s32.totalorder %s37, %s38
      %p49 = scmp.eq.s32.totalorder %s15, 0
      %p50 = por %p48, %p49
      %p51 = scmp.ne.s32.totalorder %s37, %s38
      %p52 = scmp.eq.s32.totalorder %s16, 2
      %p53 = por %p51, %p52
      %p55 = scmp.ne.s32.totalorder %s38, %s54
      %p56 = scmp.eq.s32.totalorder %s16, 0
      %p57 = por %p55, %p56
      %s59 = sadd.s32 %s58, 1
      %p62 = scmp.eq.s32.totalorder %s10, 2
      %p63 = scmp.ne.s32.totalorder %s58, %s60
      %p64 = scmp.eq.s32.totalorder %s10, 0
      %p65 = por %p63, %p64
      %p66 = scmp.ne.s32.totalorder %s58, %s60
      %p67 = scmp.eq.s32.totalorder %s15, 2
      %p68 = por %p66, %p67
      %p69 = scmp.ne.s32.totalorder %s60, %s61
      %p70 = scmp.eq.s32.totalorder %s15, 0
      %p71 = por %p69, %p70
      %p72 = scmp.ne.s32.totalorder %s60, %s61
      %p73 = scmp.eq.s32.totalorder %s16, 2
      %p74 = por %p72, %p73
      %p76 = scmp.ne.s32.totalorder %s61, %s75
      %p77 = scmp.eq.s32.totalorder %s16, 0
      %p78 = por %p76, %p77
      %s80 = sadd.s32 %s79, 1
      %p83 = scmp.eq.s32.totalorder %s10, 2
      %p84 = scmp.ne.s32.totalorder %s79, %s81
      %p85 = scmp.eq.s32.totalorder %s10, 0
      %p86 = por %p84, %p85
      %p87 = scmp.ne.s32.totalorder %s79, %s81
      %p88 = scmp.eq.s32.totalorder %s15, 2
      %p89 = por %p87, %p88
      %p90 = scmp.ne.s32.totalorder %s81, %s82
      %p91 = scmp.eq.s32.totalorder %s15, 0
      %p92 = por %p90, %p91
      %p93 = scmp.ne.s32.totalorder %s81, %s82
      %p94 = scmp.eq.s32.totalorder %s16, 2
      %p95 = por %p93, %p94
      %p97 = scmp.ne.s32.totalorder %s82, %s96
      %p98 = scmp.eq.s32.totalorder %s16, 0
      %p99 = por %p97, %p98
      %s100 = ssub.s32 %s17, %s29
      %p101 = scmp.eq.s32.totalorder %s100, 0
      %s103 = sadd.s32 %s102, 1
      %s104 = scalar_select %p101, %s102, %s103
      %p107 = pneg %p101
      %p108 = scmp.eq.s32.totalorder %s10, 2
      %p109 = por %p107, %p108
      %p110 = scmp.ne.s32.totalorder %s102, %s105
      %p111 = scmp.eq.s32.totalorder %s10, 0
      %p112 = por %p110, %p111
      %p113 = scmp.ne.s32.totalorder %s102, %s105
      %p114 = scmp.eq.s32.totalorder %s15, 2
      %p115 = por %p113, %p114
      %p116 = scmp.ne.s32.totalorder %s105, %s106
      %p117 = scmp.eq.s32.totalorder %s15, 0
      %p118 = por %p116, %p117
      %p119 = scmp.ne.s32.totalorder %s105, %s106
      %p120 = scmp.eq.s32.totalorder %s16, 2
      %p121 = por %p119, %p120
      %p123 = scmp.ne.s32.totalorder %s106, %s122
      %p124 = scmp.eq.s32.totalorder %s16, 0
      %p125 = por %p123, %p124
      %p126 = scmp.le.s32.totalorder 1, %s10
      %p127 = scmp.lt.s32.totalorder %s10, 4
      %p128 = pnand %p126, %p127
      %p129 = pneg %p128
      // Predicated region
      $region9: #{tpu_custom_call.1} parent=5 // pred_check
        _
      $region10: #{tpu_custom_call.1} parent=5 // pred_check_branch
        %131 = sbr.rel (%p128) target = $region12
      $region11: #{tpu_custom_call.1} parent=5 // pred_region
        %s132 = ssub.s32 %s10, 1
        // Predicated region
        $region13: #{tpu_custom_call.1} parent=11 // pred_check
          %p133 = pneg %p71
        $region14: #{tpu_custom_call.1} parent=11 // pred_check_branch
          %135 = sbr.rel (%p133) target = $region16
        $region15: #{tpu_custom_call.1} parent=11 // pred_region
          _
        $region16: #{tpu_custom_call.1} parent=11 // pred_fallthru
          _
        // Predicated region
        $region17: #{tpu_custom_call.1} parent=11 // pred_check
          %p136 = pneg %p92
        $region18: #{tpu_custom_call.1} parent=11 // pred_check_branch
          %138 = sbr.rel (%p136) target = $region20
        $region19: #{tpu_custom_call.1} parent=11 // pred_region
          _
        $region20: #{tpu_custom_call.1} parent=11 // pred_fallthru
          _
      $region12: #{tpu_custom_call.1} parent=5 // pred_fallthru
        _
      %p139 = scmp.lt.s32.totalorder %s10, 3
      // Predicated region
      $region21: #{tpu_custom_call.1} parent=5 // pred_check
        %p140 = pneg %p139
      $region22: #{tpu_custom_call.1} parent=5 // pred_check_branch
        %142 = sbr.rel (%p140) target = $region24
      $region23: #{tpu_custom_call.1} parent=5 // pred_region
        // Predicated region
        $region25: #{tpu_custom_call.1} parent=23 // pred_check
          %p143 = pneg %p44
        $region26: #{tpu_custom_call.1} parent=23 // pred_check_branch
          %145 = sbr.rel (%p143) target = $region28
        $region27: #{tpu_custom_call.1} parent=23 // pred_region
          %s146 = smul.u32 4, %s18
          %s147 = ssub.s32 10, %s146
          %p148 = scmp.lt.s32.totalorder %s147, 4
          %s149 = scalar_select %p148, %s147, 4
          %s150 = smul.u32 128, %s149
          %p151 = scmp.lt.s32.totalorder %s17, 0
          %s152 = scalar_select %p151, %s17, 0
          %p153 = scmp.lt.s32.totalorder %s146, 9
          %s154 = scalar_select %p153, %s146, 9
          %s155 = smul.addr %s152, 10
          %s156 = sadd.s32 %s154, %s155
          %s157 = smul.addr %s156, 8
          %s158 = scalar_lea.vmem %s0, %s157
          %s159 = smul.u32 4, %s18
          %s160 = ssub.s32 10, %s159
          %p161 = scmp.lt.s32.totalorder %s160, 4
          %s162 = scalar_select %p161, %s160, 4
          %s163 = smul.u32 128, %s162
        $region28: #{tpu_custom_call.1} parent=23 // pred_fallthru
          _
      $region24: #{tpu_custom_call.1} parent=5 // pred_fallthru
        _
      %p164 = scmp.le.s32.totalorder 1, %s10
      %p165 = scmp.lt.s32.totalorder %s10, 4
      %p166 = pnand %p164, %p165
      %p167 = pneg %p166
      // Predicated region
      $region29: #{tpu_custom_call.1} parent=5 // pred_check
        _
      $region30: #{tpu_custom_call.1} parent=5 // pred_check_branch
        %169 = sbr.rel (%p166) target = $region32
      $region31: #{tpu_custom_call.1} parent=5 // pred_region
        %s170 = ssub.s32 %s10, 1
        %s171 = smul.u32 4, %s20
        %s172 = ssub.s32 10, %s171
        %p173 = scmp.lt.s32.totalorder %s172, 4
        %s174 = scalar_select %p173, %s172, 4
        %s175 = smul.u32 128, %s174
        %p176 = scmp.lt.s32.totalorder %s19, 0
        %s177 = scalar_select %p176, %s19, 0
        %p178 = scmp.lt.s32.totalorder %s171, 9
        %s179 = scalar_select %p178, %s171, 9
        %s180 = smul.addr %s177, 10
        %s181 = sadd.s32 %s179, %s180
        %s182 = smul.addr %s181, 8
        %s183 = scalar_lea.vmem %s0, %s182
        %p184 = pneg %p50
        %p185 = pneg %p47
        %p186 = pneg %p71
        %p187 = pneg %p68
        %p188 = pneg %p92
        %p189 = pneg %p89
        %p190 = pneg %p118
        %p191 = pneg %p115
        %s192 = smul.u32 4, %s20
        %s193 = ssub.s32 10, %s192
        %p194 = scmp.lt.s32.totalorder %s193, 4
        %s195 = scalar_select %p194, %s193, 4
        %s196 = smul.u32 128, %s195
        %p197 = scmp.lt.s32.totalorder %s19, 0
        %s198 = scalar_select %p197, %s19, 0
        %p199 = scmp.lt.s32.totalorder %s192, 9
        %s200 = scalar_select %p199, %s192, 9
        %s201 = smul.addr %s198, 10
        %s202 = sadd.s32 %s200, %s201
        %s203 = smul.addr %s202, 8
        %s204 = scalar_lea.vmem %s0, %s203
        %s205 = smul.u32 4, %s20
        %s206 = ssub.s32 10, %s205
        %p207 = scmp.lt.s32.totalorder %s206, 4
        %s208 = scalar_select %p207, %s206, 4
        %s209 = smul.u32 128, %s208
        %p210 = scmp.eq.s32.totalorder %s20, 0
        // Predicated region
        $region33: #{tpu_custom_call.1} parent=31 // pred_check
          %p211 = pneg %p210
        $region34: #{tpu_custom_call.1} parent=31 // pred_check_branch
          %213 = sbr.rel (%p211) target = $region36
        $region35: #{tpu_custom_call.1} parent=31 // pred_region
          %vm214 = vcmask 61440
          %215 = vst.msk [vmem:[#allocation2] sm:$0x1f] %vm214, 0.0
        $region36: #{tpu_custom_call.1} parent=31 // pred_fallthru
          _
        %s216 = smul.u32 %s20, 512
        %s217 = scalar_lea.vmem %s1, %s216
        %v218 = vld [vmem:[%s217] sm:$0xff]
        %v219 = vld [vmem:[%s217 + $0x8] sm:$0xff]
        %v220 = vld [vmem:[%s217 + $0x10] sm:$0xff]
        %v221 = vld [vmem:[%s217 + $0x18] sm:$0xff]
        %v222 = vld [vmem:[%s217 + $0x20] sm:$0xff]
        %v223 = vld [vmem:[%s217 + $0x28] sm:$0xff]
        %v224 = vld [vmem:[%s217 + $0x30] sm:$0xff]
        %v225 = vld [vmem:[%s217 + $0x38] sm:$0xff]
        %v226 = vld [vmem:[%s217 + $0x40] sm:$0xff]
        %v227 = vld [vmem:[%s217 + $0x48] sm:$0xff]
        %v228 = vld [vmem:[%s217 + $0x50] sm:$0xff]
        %v229 = vld [vmem:[%s217 + $0x58] sm:$0xff]
        %v230 = vld [vmem:[%s217 + $0x60] sm:$0xff]
        %v231 = vld [vmem:[%s217 + $0x68] sm:$0xff]
        %v232 = vld [vmem:[%s217 + $0x70] sm:$0xff]
        %v233 = vld [vmem:[%s217 + $0x78] sm:$0xff]
        %v234 = vld [vmem:[%s217 + $0x80] sm:$0xff]
        %v235 = vld [vmem:[%s217 + $0x88] sm:$0xff]
        %v236 = vld [vmem:[%s217 + $0x90] sm:$0xff]
        %v237 = vld [vmem:[%s217 + $0x98] sm:$0xff]
        %v238 = vld [vmem:[%s217 + $0xa0] sm:$0xff]
        %v239 = vld [vmem:[%s217 + $0xa8] sm:$0xff]
        %v240 = vld [vmem:[%s217 + $0xb0] sm:$0xff]
        %v241 = vld [vmem:[%s217 + $0xb8] sm:$0xff]
        %v242 = vld [vmem:[%s217 + $0xc0] sm:$0xff]
        %v243 = vld [vmem:[%s217 + $0xc8] sm:$0xff]
        %v244 = vld [vmem:[%s217 + $0xd0] sm:$0xff]
        %v245 = vld [vmem:[%s217 + $0xd8] sm:$0xff]
        %v246 = vld [vmem:[%s217 + $0xe0] sm:$0xff]
        %v247 = vld [vmem:[%s217 + $0xe8] sm:$0xff]
        %v248 = vld [vmem:[%s217 + $0xf0] sm:$0xff]
        %v249 = vld [vmem:[%s217 + $0xf8] sm:$0xff]
        %v250 = vld [vmem:[%s217 + $0x100] sm:$0xff]
        %v251 = vld [vmem:[%s217 + $0x108] sm:$0xff]
        %v252 = vld [vmem:[%s217 + $0x110] sm:$0xff]
        %v253 = vld [vmem:[%s217 + $0x118] sm:$0xff]
        %v254 = vld [vmem:[%s217 + $0x120] sm:$0xff]
        %v255 = vld [vmem:[%s217 + $0x128] sm:$0xff]
        %v256 = vld [vmem:[%s217 + $0x130] sm:$0xff]
        %v257 = vld [vmem:[%s217 + $0x138] sm:$0xff]
        %v258 = vld [vmem:[%s217 + $0x140] sm:$0xff]
        %v259 = vld [vmem:[%s217 + $0x148] sm:$0xff]
        %v260 = vld [vmem:[%s217 + $0x150] sm:$0xff]
        %v261 = vld [vmem:[%s217 + $0x158] sm:$0xff]
        %v262 = vld [vmem:[%s217 + $0x160] sm:$0xff]
        %v263 = vld [vmem:[%s217 + $0x168] sm:$0xff]
        %v264 = vld [vmem:[%s217 + $0x170] sm:$0xff]
        %v265 = vld [vmem:[%s217 + $0x178] sm:$0xff]
        %v266 = vld [vmem:[%s217 + $0x180] sm:$0xff]
        %v267 = vld [vmem:[%s217 + $0x188] sm:$0xff]
        %v268 = vld [vmem:[%s217 + $0x190] sm:$0xff]
        %v269 = vld [vmem:[%s217 + $0x198] sm:$0xff]
        %v270 = vld [vmem:[%s217 + $0x1a0] sm:$0xff]
        %v271 = vld [vmem:[%s217 + $0x1a8] sm:$0xff]
        %v272 = vld [vmem:[%s217 + $0x1b0] sm:$0xff]
        %v273 = vld [vmem:[%s217 + $0x1b8] sm:$0xff]
        %v274 = vld [vmem:[%s217 + $0x1c0] sm:$0xff]
        %v275 = vld [vmem:[%s217 + $0x1c8] sm:$0xff]
        %v276 = vld [vmem:[%s217 + $0x1d0] sm:$0xff]
        %v277 = vld [vmem:[%s217 + $0x1d8] sm:$0xff]
        %v278 = vld [vmem:[%s217 + $0x1e0] sm:$0xff]
        %v279 = vld [vmem:[%s217 + $0x1e8] sm:$0xff]
        %v280 = vld [vmem:[%s217 + $0x1f0] sm:$0xff]
        %v281 = vld [vmem:[%s217 + $0x1f8] sm:$0xff]
        %v282 = vld [vmem:[%s204] sm:$0x1f]
        %v283 = vld [vmem:[%s204 + $0x8] sm:$0x1f]
        %v284 = vld [vmem:[%s204 + $0x10] sm:$0x1f]
        %v285 = vld [vmem:[%s204 + $0x18] sm:$0x1f]
        %v286 = vlaneseq
        %v287 = vand.u32 %v286, 127
        %v288 = vadd.s32 %v287, 128
        %v289 = vadd.s32 %v287, 256
        %v290 = vadd.s32 %v287, 384
        %v291 = vstv %s216
        %v292 = vadd.s32 %v291, %v287
        %v293 = vadd.s32 %v291, %v288
        %v294 = vadd.s32 %v291, %v289
        %v295 = vadd.s32 %v291, %v290
        %vm296 = vcmp.lt.s32.totalorder %v292, 1176
        %vm297 = vcmp.lt.s32.totalorder %v293, 1176
        %vm298 = vcmp.lt.s32.totalorder %v294, 1176
        %vm299 = vcmp.lt.s32.totalorder %v295, 1176
        %v300 = vsel %vm296, %v282, 0.0
        %v301 = vsel %vm297, %v283, 0.0
        %v302 = vsel %vm298, %v284, 0.0
        %v303 = vsel %vm299, %v285, 0.0
        %v304 = vld [vmem:[#allocation2] sm:$0x1f]
        %305 = vmatprep.subr.mxu0 0.0
        %306 = vmatpush1.msra.mxu0 %v218
        %307 = vmatprep.subr.mxu0 0.0
        %308 = vmatpush1.msra.mxu0 %v219
        %309 = vmatprep.subr.mxu0 0.0
        %310 = vmatpush1.msra.mxu0 %v220
        %311 = vmatprep.subr.mxu0 0.0
        %312 = vmatpush1.msra.mxu0 %v221
        %313 = vmatprep.subr.mxu0 0.0
        %314 = vmatpush1.msra.mxu0 %v222
        %315 = vmatprep.subr.mxu0 0.0
        %316 = vmatpush1.msra.mxu0 %v223
        %317 = vmatprep.subr.mxu0 0.0
        %318 = vmatpush1.msra.mxu0 %v224
        %319 = vmatprep.subr.mxu0 0.0
        %320 = vmatpush1.msra.mxu0 %v225
        %321 = vmatprep.subr.mxu0 0.0
        %322 = vmatpush1.msra.mxu0 %v226
        %323 = vmatprep.subr.mxu0 0.0
        %324 = vmatpush1.msra.mxu0 %v227
        %325 = vmatprep.subr.mxu0 0.0
        %326 = vmatpush1.msra.mxu0 %v228
        %327 = vmatprep.subr.mxu0 0.0
        %328 = vmatpush1.msra.mxu0 %v229
        %329 = vmatprep.subr.mxu0 0.0
        %330 = vmatpush1.msra.mxu0 %v230
        %331 = vmatprep.subr.mxu0 0.0
        %332 = vmatpush1.msra.mxu0 %v231
        %333 = vmatprep.subr.mxu0 0.0
        %334 = vmatpush1.msra.mxu0 %v232
        %335 = vmatprep.subr.mxu0 0.0
        %336 = vmatpush1.msra.mxu0 %v233
        %337 = vmatprep.subr.mxu0 0.0
        %338 = vmatpush1.msra.mxu0 %v234
        %339 = vmatprep.subr.mxu0 0.0
        %340 = vmatpush1.msra.mxu0 %v235
        %341 = vmatprep.subr.mxu0 0.0
        %342 = vmatpush1.msra.mxu0 %v236
        %343 = vmatprep.subr.mxu0 0.0
        %344 = vmatpush1.msra.mxu0 %v237
        %345 = vmatprep.subr.mxu0 0.0
        %346 = vmatpush1.msra.mxu0 %v238
        %347 = vmatprep.subr.mxu0 0.0
        %348 = vmatpush1.msra.mxu0 %v239
        %349 = vmatprep.subr.mxu0 0.0
        %350 = vmatpush1.msra.mxu0 %v240
        %351 = vmatprep.subr.mxu0 0.0
        %352 = vmatpush1.msra.mxu0 %v241
        %353 = vmatprep.subr.mxu0 0.0
        %354 = vmatpush1.msra.mxu0 %v242
        %355 = vmatprep.subr.mxu0 0.0
        %356 = vmatpush1.msra.mxu0 %v243
        %357 = vmatprep.subr.mxu0 0.0
        %358 = vmatpush1.msra.mxu0 %v244
        %359 = vmatprep.subr.mxu0 0.0
        %360 = vmatpush1.msra.mxu0 %v245
        %361 = vmatprep.subr.mxu0 0.0
        %362 = vmatpush1.msra.mxu0 %v246
        %363 = vmatprep.subr.mxu0 0.0
        %364 = vmatpush1.msra.mxu0 %v247
        %365 = vmatprep.subr.mxu0 0.0
        %366 = vmatpush1.msra.mxu0 %v248
        %367 = vmatprep.subr.mxu0 0.0
        %368 = vmatpush1.msra.mxu0 %v249
        %369 = vmatprep.mubr.f32.mxu0 %v301
        %370 = vmatmul.mubr.f32.gmra.mrb[0].mxu0 %v300
        %v371 = vpop.f32.mrb[0].mxu0
        %v372 = vadd.f32 0.0, %v371
        %v373 = vpop.f32.mrb[0].mxu0
        %374 = vdwg.mxu0
        %375 = vmatprep.subr.mxu0 0.0
        %376 = vmatpush1.msra.mxu0 %v250
        %377 = vmatprep.subr.mxu0 0.0
        %378 = vmatpush1.msra.mxu0 %v251
        %379 = vmatprep.subr.mxu0 0.0
        %380 = vmatpush1.msra.mxu0 %v252
        %381 = vmatprep.subr.mxu0 0.0
        %382 = vmatpush1.msra.mxu0 %v253
        %383 = vmatprep.subr.mxu0 0.0
        %384 = vmatpush1.msra.mxu0 %v254
        %385 = vmatprep.subr.mxu0 0.0
        %386 = vmatpush1.msra.mxu0 %v255
        %387 = vmatprep.subr.mxu0 0.0
        %388 = vmatpush1.msra.mxu0 %v256
        %389 = vmatprep.subr.mxu0 0.0
        %390 = vmatpush1.msra.mxu0 %v257
        %391 = vmatprep.subr.mxu0 0.0
        %392 = vmatpush1.msra.mxu0 %v258
        %393 = vmatprep.subr.mxu0 0.0
        %394 = vmatpush1.msra.mxu0 %v259
        %395 = vmatprep.subr.mxu0 0.0
        %396 = vmatpush1.msra.mxu0 %v260
        %397 = vmatprep.subr.mxu0 0.0
        %398 = vmatpush1.msra.mxu0 %v261
        %399 = vmatprep.subr.mxu0 0.0
        %400 = vmatpush1.msra.mxu0 %v262
        %401 = vmatprep.subr.mxu0 0.0
        %402 = vmatpush1.msra.mxu0 %v263
        %403 = vmatprep.subr.mxu0 0.0
        %404 = vmatpush1.msra.mxu0 %v264
        %405 = vmatprep.subr.mxu0 0.0
        %406 = vmatpush1.msra.mxu0 %v265
        %407 = vmatprep.subr.mxu0 0.0
        %408 = vmatpush1.msra.mxu0 %v266
        %409 = vmatprep.subr.mxu0 0.0
        %410 = vmatpush1.msra.mxu0 %v267
        %411 = vmatprep.subr.mxu0 0.0
        %412 = vmatpush1.msra.mxu0 %v268
        %413 = vmatprep.subr.mxu0 0.0
        %414 = vmatpush1.msra.mxu0 %v269
        %415 = vmatprep.subr.mxu0 0.0
        %416 = vmatpush1.msra.mxu0 %v270
        %417 = vmatprep.subr.mxu0 0.0
        %418 = vmatpush1.msra.mxu0 %v271
        %419 = vmatprep.subr.mxu0 0.0
        %420 = vmatpush1.msra.mxu0 %v272
        %421 = vmatprep.subr.mxu0 0.0
        %422 = vmatpush1.msra.mxu0 %v273
        %423 = vmatprep.subr.mxu0 0.0
        %424 = vmatpush1.msra.mxu0 %v274
        %425 = vmatprep.subr.mxu0 0.0
        %426 = vmatpush1.msra.mxu0 %v275
        %427 = vmatprep.subr.mxu0 0.0
        %428 = vmatpush1.msra.mxu0 %v276
        %429 = vmatprep.subr.mxu0 0.0
        %430 = vmatpush1.msra.mxu0 %v277
        %431 = vmatprep.subr.mxu0 0.0
        %432 = vmatpush1.msra.mxu0 %v278
        %433 = vmatprep.subr.mxu0 0.0
        %434 = vmatpush1.msra.mxu0 %v279
        %435 = vmatprep.subr.mxu0 0.0
        %436 = vmatpush1.msra.mxu0 %v280
        %437 = vmatprep.subr.mxu0 0.0
        %438 = vmatpush1.msra.mxu0 %v281
        %439 = vmatprep.mubr.f32.mxu0 %v303
        %440 = vmatmul.mubr.f32.gmra.mrb[0].mxu0 %v302
        %v441 = vpop.f32.mrb[0].mxu0
        %v442 = vadd.f32 %v372, %v441
        %v443 = vpop.f32.mrb[0].mxu0
        %444 = vdwg.mxu0
        %v445 = vadd.f32 %v304, %v442
        %vm446 = vcmask 61440
        %447 = vst.msk [vmem:[#allocation2] sm:$0x1f] %vm446, %v445
        %p448 = scmp.eq.s32.totalorder %s20, 2
        // Predicated region
        $region37: #{tpu_custom_call.1} parent=31 // pred_check
          %p449 = pneg %p448
        $region38: #{tpu_custom_call.1} parent=31 // pred_check_branch
          %451 = sbr.rel (%p449) target = $region40
        $region39: #{tpu_custom_call.1} parent=31 // pred_region
          %v452 = vld [vmem:[#allocation2] sm:$0x1f]
          %v453 = vld [vmem:[%s2] sm:$0x1]
          %v455 = vlaneseq
          %v456 = vshrl.u32 %v455, 7
          %v457 = vsub.s32 0, %v456
          %v458 = vrot.slane %v453, %v457
          %v460 = vadd.f32 %v452, %v458
          %461 = vst.msk [vmem:[#allocation3] sm:$0x1f] %vm446, %v460
        $region40: #{tpu_custom_call.1} parent=31 // pred_fallthru
          _
        // Predicated region
        $region41: #{tpu_custom_call.1} parent=31 // pred_check
          %p462 = pneg %p115
        $region42: #{tpu_custom_call.1} parent=31 // pred_check_branch
          %464 = sbr.rel (%p462) target = $region44
        $region43: #{tpu_custom_call.1} parent=31 // pred_region
          %s466 = ssub.s32 128, 128
          %467 = vsyncadd [#allocation4], %s466
          %s468 = smul.addr %s19, 128
          %s469 = scalar_lea.hbm %s3, %s468
          %s471 = sshll.u32 [#allocation3], 4
          %s472 = int_to_ptr.vmem [resolvable:$true] %s471
          %474 = dma.vmem_to_hbm [thread:$0]  %s472, 128, %s469, [#allocation4]
        $region44: #{tpu_custom_call.1} parent=31 // pred_fallthru
          _
        // Predicated region
        $region45: #{tpu_custom_call.1} parent=31 // pred_check
          %p475 = pneg %p115
        $region46: #{tpu_custom_call.1} parent=31 // pred_check_branch
          %477 = sbr.rel (%p475) target = $region48
        $region47: #{tpu_custom_call.1} parent=31 // pred_region
          %478 = dma.done [#allocation4], 128
        $region48: #{tpu_custom_call.1} parent=31 // pred_fallthru
          _
      $region32: #{tpu_custom_call.1} parent=5 // pred_fallthru
        _
      %p479 = scmp.le.s32.totalorder 2, %s10
      // Predicated region
      $region49: #{tpu_custom_call.1} parent=5 // pred_check
        %p480 = pneg %p479
      $region50: #{tpu_custom_call.1} parent=5 // pred_check_branch
        %482 = sbr.rel (%p480) target = $region52
      $region51: #{tpu_custom_call.1} parent=5 // pred_region
        %s483 = ssub.s32 %s10, 2
      $region52: #{tpu_custom_call.1} parent=5 // pred_fallthru
        _
    $region6: #{tpu_custom_call.1} parent=1 // loop_footer
      %s14 = sadd.s32 1, %s10
    $region7: #{tpu_custom_call.1} parent=1 // loop_footer_branch
      %9 = sbr.rel target = $region3
    $region8: #{tpu_custom_call.1} parent=1 // loop_exit
      _
    %484 = vsyncpa [#allocation4], 1
    %s485 = scalar_lea.sflag [#allocation4], 1
    %486 = vsyncpa %s485, 1

</llo_original>
